<compile_context>
chip_gen: v5e
topology: v5e:2x2
jax: 0.10.0
libtpu: 0.0.40
codegen_flags: <defaults>
</compile_context>

<pallas_src>
import jax
import jax.numpy as jnp
from jax.experimental import pallas as pl
from jax.experimental.pallas import tpu as pltpu


def attention_kernel(x_ref, w_ref, b_ref, o_ref):
    # x_ref: (TB, S*F) flat, lane-dense
    # w_ref: (1, F)    resident in VMEM across the grid
    # b_ref: (1, S)    resident in VMEM across the grid
    # o_ref: (TB, F)
    F = w_ref.shape[-1]
    S = b_ref.shape[-1]

    x = x_ref[...].astype(jnp.float32)          # (TB, S*F); no-op cast for f32 input
    w = w_ref[...].astype(jnp.float32)          # (1, F)
    b = b_ref[...].astype(jnp.float32)          # (1, S)
    tb = x.shape[0]

    # Single pass over the (small, static) step axis, working on the flat layout:
    #   e_s   = exp(tanh(<x_s, w> + b_s))                       (TB, 1)
    #   out   = (sum_s x_s * e_s) / (sum_s e_s + 1e-10)         (TB, F)
    # which is algebraically identical to normalizing first (division distributes
    # over the sum). Everything is exact f32 on the VPU/XLU; the degenerate
    # (F,1)/(1,F) contractions stay off the MXU.
    out_acc = jnp.zeros((tb, F), jnp.float32)
    denom = jnp.zeros((tb, 1), jnp.float32)
    for s in range(S):                                      # S is small (8): static unroll
        xs = x[:, s * F:(s + 1) * F]                        # (TB, F) static lane slice
        score = jnp.sum(xs * w, axis=-1, keepdims=True)     # VPU mul + XLU lane reduce
        score = score + b[:, s:s + 1]                       # (TB, 1)
        e_s = jnp.exp(jnp.tanh(score))                      # EUP; tanh bounds it, no max-sub needed
        denom = denom + e_s
        out_acc = out_acc + xs * e_s

    out = out_acc / (denom + 1e-10)                         # exact f32 division
    o_ref[...] = out.astype(o_ref.dtype)


def _choose_block_b(B, row_bytes):
    """Batch tile targeting ~4 MiB of flat x per block.

    Big enough that the ~0.35 us per-grid-step overhead is a small fraction of the
    per-step DMA time on v5e/v6e/v7x; small enough that double-buffered x + out
    blocks + in-kernel temporaries stay comfortably under a 48 MiB scoped-VMEM
    budget (v7x has only 64 MiB physical per TensorCore).
    """
    target_bytes = 4 * 1024 * 1024
    rows = max(8, target_bytes // max(1, row_bytes))
    if rows >= B:
        return B                        # whole batch in a single block
    return int(rows) // 8 * 8           # keep second-minor block dim a multiple of 8


def attention_forward(x, weight, bias, *, block_b=None):
    """x: (B, S, F), weight: (F, 1), bias: (S,) -> (B, F)."""
    B, S, F = x.shape
    itemsize = jnp.dtype(x.dtype).itemsize
    if block_b is None:
        block_b = _choose_block_b(B, S * F * itemsize)

    # Glue reshapes in plain JAX (free, contiguous):
    #   x  -> (B, S*F) so the kernel streams a lane-dense slab,
    #   w  -> (1, F), b -> (1, S) small resident operands.
    x_flat = x.reshape(B, S * F)
    w2d = weight.reshape(1, F).astype(jnp.float32)
    b2d = bias.reshape(1, S).astype(jnp.float32)

    grid = (pl.cdiv(B, block_b),)

    return pl.pallas_call(
        attention_kernel,
        out_shape=jax.ShapeDtypeStruct((B, F), x.dtype),
        grid=grid,
        in_specs=[
            pl.BlockSpec((block_b, S * F), lambda i: (i, 0)),
            pl.BlockSpec((1, F), lambda i: (0, 0)),   # resident across the grid
            pl.BlockSpec((1, S), lambda i: (0, 0)),   # resident across the grid
        ],
        out_specs=pl.BlockSpec((block_b, F), lambda i: (i, 0)),
        compiler_params=pltpu.CompilerParams(
            # Shard the batch grid over v7x's two TensorCores; if a trace shows
            # single-TC execution there, switch to pltpu.CORE_PARALLEL.
            dimension_semantics=("parallel",),
            vmem_limit_bytes=48 * 1024 * 1024,
        ),
        cost_estimate=pl.CostEstimate(
            flops=int(4 * B * S * F),
            transcendentals=int(2 * B * S),
            bytes_accessed=int((B * S * F + B * F) * itemsize + (F + S) * 4),
        ),
    )(x_flat, w2d, b2d)


def reference_forward(x, weight, bias):
    # Pure-JAX reference mirroring the PyTorch forward (HIGHEST precision so the
    # reference itself is exact f32 on TPU).
    eij = jnp.einsum("bsf,f->bs", x, weight[:, 0],
                     precision=jax.lax.Precision.HIGHEST) + bias
    eij = jnp.tanh(eij)
    a = jnp.exp(eij)
    a = a / (jnp.sum(a, axis=1, keepdims=True) + 1e-10)
    return jnp.sum(x * a[..., None], axis=1)


if __name__ == "__main__":
    # Shapes consistent with the module: step_dim (seq) = 8, feature_dim (hidden) = 32.
    B, S, F = 2, 8, 32

    key = jax.random.PRNGKey(0)
    kx, kw = jax.random.split(key)

    x = jax.random.normal(kx, (B, S, F), dtype=jnp.float32)

    # kaiming_uniform_ on a (F, 1) tensor: fan_in = 1 -> bound = sqrt(6 / 1).
    bound = jnp.sqrt(6.0)
    weight = jax.random.uniform(kw, (F, 1), dtype=jnp.float32,
                                minval=-bound, maxval=bound)
    bias = jnp.zeros((S,), dtype=jnp.float32)   # self.b initialized to zeros

    out = jax.block_until_ready(attention_forward(x, weight, bias))
    ref = reference_forward(x, weight, bias)

    assert out.shape == (B, F)
    max_err = float(jnp.max(jnp.abs(out - ref)))
    # Exact f32 math throughout (no approximate reciprocal), so a tight tolerance holds.
    assert jnp.allclose(out, ref, atol=1e-4, rtol=1e-4), f"max_abs_err={max_err}"

    print("KERNEL_OK")
</pallas_src>

<mosaic_0001>
module attributes {stable_mosaic.version = 11 : i64} {
  func.func @attention_kernel(%arg0: i32, %arg1: memref<2x256xf32, #tpu.memory_space<vmem>>, %arg2: memref<1x32xf32, #tpu.memory_space<vmem>>, %arg3: memref<1x8xf32, #tpu.memory_space<vmem>>, %arg4: memref<2x32xf32, #tpu.memory_space<vmem>>) attributes {dimension_semantics = [#tpu.dimension_semantics<parallel>], iteration_bounds = array<i64: 1>, scalar_prefetch = 0 : i64, scratch_operands = 0 : i64, tpu.core_type = #tpu.core_type<tc>, window_params = [{transform_indices = @transform_0, window_bounds = array<i64: 2, 256>}, {pipeline_mode = #tpu.pipeline_mode<synchronous>, transform_indices = @transform_1, window_bounds = array<i64: 1, 32>}, {pipeline_mode = #tpu.pipeline_mode<synchronous>, transform_indices = @transform_2, window_bounds = array<i64: 1, 8>}, {transform_indices = @transform_3, window_bounds = array<i64: 2, 32>}]} {
    %c0 = arith.constant 0 : index
    %c0_0 = arith.constant 0 : index
    %0 = vector.load %arg1[%c0, %c0_0] : memref<2x256xf32, #tpu.memory_space<vmem>>, vector<2x256xf32>
    %c0_1 = arith.constant 0 : index
    %c0_2 = arith.constant 0 : index
    %1 = vector.load %arg2[%c0_1, %c0_2] : memref<1x32xf32, #tpu.memory_space<vmem>>, vector<1x32xf32>
    %c0_3 = arith.constant 0 : index
    %c0_4 = arith.constant 0 : index
    %2 = vector.load %arg3[%c0_3, %c0_4] : memref<1x8xf32, #tpu.memory_space<vmem>>, vector<1x8xf32>
    %cst = arith.constant 0.000000e+00 : f32
    %3 = vector.broadcast %cst : f32 to vector<2x32xf32>
    %cst_5 = arith.constant 0.000000e+00 : f32
    %4 = vector.broadcast %cst_5 : f32 to vector<2x1xf32>
    %5 = vector.extract_strided_slice %0 {offsets = [0, 0], sizes = [2, 32], strides = [1, 1]} : vector<2x256xf32> to vector<2x32xf32>
    %6 = vector.broadcast %1 : vector<1x32xf32> to vector<2x32xf32>
    %7 = arith.mulf %5, %6 : vector<2x32xf32>
    %cst_6 = arith.constant dense<0.000000e+00> : vector<2xf32>
    %8 = vector.multi_reduction <add>, %7, %cst_6 [1] : vector<2x32xf32> to vector<2xf32>
    %9 = vector.shape_cast %8 : vector<2xf32> to vector<2x1xf32>
    %10 = vector.extract_strided_slice %2 {offsets = [0, 0], sizes = [1, 1], strides = [1, 1]} : vector<1x8xf32> to vector<1x1xf32>
    %11 = vector.broadcast %10 : vector<1x1xf32> to vector<2x1xf32>
    %12 = arith.addf %9, %11 : vector<2x1xf32>
    %13 = math.tanh %12 : vector<2x1xf32>
    %14 = math.exp %13 : vector<2x1xf32>
    %15 = arith.addf %4, %14 : vector<2x1xf32>
    %16 = vector.broadcast %14 : vector<2x1xf32> to vector<2x32xf32>
    %17 = arith.mulf %5, %16 : vector<2x32xf32>
    %18 = arith.addf %3, %17 : vector<2x32xf32>
    %19 = vector.extract_strided_slice %0 {offsets = [0, 32], sizes = [2, 32], strides = [1, 1]} : vector<2x256xf32> to vector<2x32xf32>
    %20 = vector.broadcast %1 : vector<1x32xf32> to vector<2x32xf32>
    %21 = arith.mulf %19, %20 : vector<2x32xf32>
    %cst_7 = arith.constant dense<0.000000e+00> : vector<2xf32>
    %22 = vector.multi_reduction <add>, %21, %cst_7 [1] : vector<2x32xf32> to vector<2xf32>
    %23 = vector.shape_cast %22 : vector<2xf32> to vector<2x1xf32>
    %24 = vector.extract_strided_slice %2 {offsets = [0, 1], sizes = [1, 1], strides = [1, 1]} : vector<1x8xf32> to vector<1x1xf32>
    %25 = vector.broadcast %24 : vector<1x1xf32> to vector<2x1xf32>
    %26 = arith.addf %23, %25 : vector<2x1xf32>
    %27 = math.tanh %26 : vector<2x1xf32>
    %28 = math.exp %27 : vector<2x1xf32>
    %29 = arith.addf %15, %28 : vector<2x1xf32>
    %30 = vector.broadcast %28 : vector<2x1xf32> to vector<2x32xf32>
    %31 = arith.mulf %19, %30 : vector<2x32xf32>
    %32 = arith.addf %18, %31 : vector<2x32xf32>
    %33 = vector.extract_strided_slice %0 {offsets = [0, 64], sizes = [2, 32], strides = [1, 1]} : vector<2x256xf32> to vector<2x32xf32>
    %34 = vector.broadcast %1 : vector<1x32xf32> to vector<2x32xf32>
    %35 = arith.mulf %33, %34 : vector<2x32xf32>
    %cst_8 = arith.constant dense<0.000000e+00> : vector<2xf32>
    %36 = vector.multi_reduction <add>, %35, %cst_8 [1] : vector<2x32xf32> to vector<2xf32>
    %37 = vector.shape_cast %36 : vector<2xf32> to vector<2x1xf32>
    %38 = vector.extract_strided_slice %2 {offsets = [0, 2], sizes = [1, 1], strides = [1, 1]} : vector<1x8xf32> to vector<1x1xf32>
    %39 = vector.broadcast %38 : vector<1x1xf32> to vector<2x1xf32>
    %40 = arith.addf %37, %39 : vector<2x1xf32>
    %41 = math.tanh %40 : vector<2x1xf32>
    %42 = math.exp %41 : vector<2x1xf32>
    %43 = arith.addf %29, %42 : vector<2x1xf32>
    %44 = vector.broadcast %42 : vector<2x1xf32> to vector<2x32xf32>
    %45 = arith.mulf %33, %44 : vector<2x32xf32>
    %46 = arith.addf %32, %45 : vector<2x32xf32>
    %47 = vector.extract_strided_slice %0 {offsets = [0, 96], sizes = [2, 32], strides = [1, 1]} : vector<2x256xf32> to vector<2x32xf32>
    %48 = vector.broadcast %1 : vector<1x32xf32> to vector<2x32xf32>
    %49 = arith.mulf %47, %48 : vector<2x32xf32>
    %cst_9 = arith.constant dense<0.000000e+00> : vector<2xf32>
    %50 = vector.multi_reduction <add>, %49, %cst_9 [1] : vector<2x32xf32> to vector<2xf32>
    %51 = vector.shape_cast %50 : vector<2xf32> to vector<2x1xf32>
    %52 = vector.extract_strided_slice %2 {offsets = [0, 3], sizes = [1, 1], strides = [1, 1]} : vector<1x8xf32> to vector<1x1xf32>
    %53 = vector.broadcast %52 : vector<1x1xf32> to vector<2x1xf32>
    %54 = arith.addf %51, %53 : vector<2x1xf32>
    %55 = math.tanh %54 : vector<2x1xf32>
    %56 = math.exp %55 : vector<2x1xf32>
    %57 = arith.addf %43, %56 : vector<2x1xf32>
    %58 = vector.broadcast %56 : vector<2x1xf32> to vector<2x32xf32>
    %59 = arith.mulf %47, %58 : vector<2x32xf32>
    %60 = arith.addf %46, %59 : vector<2x32xf32>
    %61 = vector.extract_strided_slice %0 {offsets = [0, 128], sizes = [2, 32], strides = [1, 1]} : vector<2x256xf32> to vector<2x32xf32>
    %62 = vector.broadcast %1 : vector<1x32xf32> to vector<2x32xf32>
    %63 = arith.mulf %61, %62 : vector<2x32xf32>
    %cst_10 = arith.constant dense<0.000000e+00> : vector<2xf32>
    %64 = vector.multi_reduction <add>, %63, %cst_10 [1] : vector<2x32xf32> to vector<2xf32>
    %65 = vector.shape_cast %64 : vector<2xf32> to vector<2x1xf32>
    %66 = vector.extract_strided_slice %2 {offsets = [0, 4], sizes = [1, 1], strides = [1, 1]} : vector<1x8xf32> to vector<1x1xf32>
    %67 = vector.broadcast %66 : vector<1x1xf32> to vector<2x1xf32>
    %68 = arith.addf %65, %67 : vector<2x1xf32>
    %69 = math.tanh %68 : vector<2x1xf32>
    %70 = math.exp %69 : vector<2x1xf32>
    %71 = arith.addf %57, %70 : vector<2x1xf32>
    %72 = vector.broadcast %70 : vector<2x1xf32> to vector<2x32xf32>
    %73 = arith.mulf %61, %72 : vector<2x32xf32>
    %74 = arith.addf %60, %73 : vector<2x32xf32>
    %75 = vector.extract_strided_slice %0 {offsets = [0, 160], sizes = [2, 32], strides = [1, 1]} : vector<2x256xf32> to vector<2x32xf32>
    %76 = vector.broadcast %1 : vector<1x32xf32> to vector<2x32xf32>
    %77 = arith.mulf %75, %76 : vector<2x32xf32>
    %cst_11 = arith.constant dense<0.000000e+00> : vector<2xf32>
    %78 = vector.multi_reduction <add>, %77, %cst_11 [1] : vector<2x32xf32> to vector<2xf32>
    %79 = vector.shape_cast %78 : vector<2xf32> to vector<2x1xf32>
    %80 = vector.extract_strided_slice %2 {offsets = [0, 5], sizes = [1, 1], strides = [1, 1]} : vector<1x8xf32> to vector<1x1xf32>
    %81 = vector.broadcast %80 : vector<1x1xf32> to vector<2x1xf32>
    %82 = arith.addf %79, %81 : vector<2x1xf32>
    %83 = math.tanh %82 : vector<2x1xf32>
    %84 = math.exp %83 : vector<2x1xf32>
    %85 = arith.addf %71, %84 : vector<2x1xf32>
    %86 = vector.broadcast %84 : vector<2x1xf32> to vector<2x32xf32>
    %87 = arith.mulf %75, %86 : vector<2x32xf32>
    %88 = arith.addf %74, %87 : vector<2x32xf32>
    %89 = vector.extract_strided_slice %0 {offsets = [0, 192], sizes = [2, 32], strides = [1, 1]} : vector<2x256xf32> to vector<2x32xf32>
    %90 = vector.broadcast %1 : vector<1x32xf32> to vector<2x32xf32>
    %91 = arith.mulf %89, %90 : vector<2x32xf32>
    %cst_12 = arith.constant dense<0.000000e+00> : vector<2xf32>
    %92 = vector.multi_reduction <add>, %91, %cst_12 [1] : vector<2x32xf32> to vector<2xf32>
    %93 = vector.shape_cast %92 : vector<2xf32> to vector<2x1xf32>
    %94 = vector.extract_strided_slice %2 {offsets = [0, 6], sizes = [1, 1], strides = [1, 1]} : vector<1x8xf32> to vector<1x1xf32>
    %95 = vector.broadcast %94 : vector<1x1xf32> to vector<2x1xf32>
    %96 = arith.addf %93, %95 : vector<2x1xf32>
    %97 = math.tanh %96 : vector<2x1xf32>
    %98 = math.exp %97 : vector<2x1xf32>
    %99 = arith.addf %85, %98 : vector<2x1xf32>
    %100 = vector.broadcast %98 : vector<2x1xf32> to vector<2x32xf32>
    %101 = arith.mulf %89, %100 : vector<2x32xf32>
    %102 = arith.addf %88, %101 : vector<2x32xf32>
    %103 = vector.extract_strided_slice %0 {offsets = [0, 224], sizes = [2, 32], strides = [1, 1]} : vector<2x256xf32> to vector<2x32xf32>
    %104 = vector.broadcast %1 : vector<1x32xf32> to vector<2x32xf32>
    %105 = arith.mulf %103, %104 : vector<2x32xf32>
    %cst_13 = arith.constant dense<0.000000e+00> : vector<2xf32>
    %106 = vector.multi_reduction <add>, %105, %cst_13 [1] : vector<2x32xf32> to vector<2xf32>
    %107 = vector.shape_cast %106 : vector<2xf32> to vector<2x1xf32>
    %108 = vector.extract_strided_slice %2 {offsets = [0, 7], sizes = [1, 1], strides = [1, 1]} : vector<1x8xf32> to vector<1x1xf32>
    %109 = vector.broadcast %108 : vector<1x1xf32> to vector<2x1xf32>
    %110 = arith.addf %107, %109 : vector<2x1xf32>
    %111 = math.tanh %110 : vector<2x1xf32>
    %112 = math.exp %111 : vector<2x1xf32>
    %113 = arith.addf %99, %112 : vector<2x1xf32>
    %114 = vector.broadcast %112 : vector<2x1xf32> to vector<2x32xf32>
    %115 = arith.mulf %103, %114 : vector<2x32xf32>
    %116 = arith.addf %102, %115 : vector<2x32xf32>
    %cst_14 = arith.constant 1.000000e-10 : f32
    %117 = vector.broadcast %cst_14 : f32 to vector<2x1xf32>
    %118 = arith.addf %113, %117 : vector<2x1xf32>
    %119 = vector.broadcast %118 : vector<2x1xf32> to vector<2x32xf32>
    %120 = arith.divf %116, %119 : vector<2x32xf32>
    %c0_15 = arith.constant 0 : index
    %c0_16 = arith.constant 0 : index
    %121 = vector.load %arg4[%c0_15, %c0_16] : memref<2x32xf32, #tpu.memory_space<vmem>>, vector<2x32xf32>
    tpu.vector_store %arg4[%c0_15, %c0_16], %120 {strides = array<i32>} : memref<2x32xf32, #tpu.memory_space<vmem>>, vector<2x32xf32>,
    return
  }
  func.func @transform_0(%arg0: i32) -> (i32, i32) {
    %c0_i32 = arith.constant 0 : i32
    %c0_i32_0 = arith.constant 0 : i32
    return %arg0, %c0_i32 : i32, i32
  }
  func.func @transform_1(%arg0: i32) -> (i32, i32) {
    %c0_i32 = arith.constant 0 : i32
    %c0_i32_0 = arith.constant 0 : i32
    %c0_i32_1 = arith.constant 0 : i32
    return %c0_i32, %c0_i32_0 : i32, i32
  }
  func.func @transform_2(%arg0: i32) -> (i32, i32) {
    %c0_i32 = arith.constant 0 : i32
    %c0_i32_0 = arith.constant 0 : i32
    %c0_i32_1 = arith.constant 0 : i32
    return %c0_i32, %c0_i32_0 : i32, i32
  }
  func.func @transform_3(%arg0: i32) -> (i32, i32) {
    %c0_i32 = arith.constant 0 : i32
    %c0_i32_0 = arith.constant 0 : i32
    return %arg0, %c0_i32 : i32, i32
  }
}

</mosaic_0001>

<llo_original>
// kernel: tpu_custom_call.1
$region0: #{tpu_custom_call.1}
  #allocation0 [shape = 'u32[]', space=smem, size = 0x4, offset = 0x4, fixed_abs, tag = 'smem constant byte address 0x4 - core index']
  #allocation1 [shape = 'u32[72,128]{1,0:T(1,128)}', space=vmem, size = 0x9000, scoped, tag = 'internal scratch']
  %s0 = inlined_call_operand.hbm [shape: f32[2,256], index: 0, kind: input, shape index: {}]
  %s1 = inlined_call_operand.hbm [shape: f32[1,32], index: 1, kind: input, shape index: {}]
  %s2 = inlined_call_operand.vmem [shape: f32[1,8], index: 2, kind: input, shape index: {}]
  %s3 = inlined_call_operand.hbm [shape: f32[2,32], index: 3, kind: output, shape index: {}]
  %s4 = sld [smem:[#allocation0]]
  $region30: #{tpu_custom_call.1} parent=0
    _
  %s6 = ssub.s32 1, %s4
  %s7 = scalar_select 0, %s6, %s4
  $region1: #{tpu_custom_call.1} parent=0
    #allocation2 [shape = 'u8[2048]{0}', space=vmem, size = 0x800, scoped, tag = 'input window, operand 0, single buffered']
    #allocation3 [shape = 's32[1]{0}', space=sflag, size = 0x4, scoped, tag = 'scoped memory for tpu_custom_call.1']
    #allocation4 [shape = 's32[1]{0}', space=sflag, size = 0x4, scoped, tag = 'scoped memory for tpu_custom_call.1']
    #allocation5 [shape = 'u8[512]{0}', space=vmem, size = 0x400, scoped, tag = 'input window, operand 1, single buffered']
    #allocation6 [shape = 's32[1]{0}', space=sflag, size = 0x4, scoped, tag = 'scoped memory for tpu_custom_call.1']
    #allocation7 [shape = 'u8[1024]{0}', space=vmem, size = 0x400, scoped, tag = 'output window, operand 0, single buffered']
    %8 = vsyncpa [#allocation3], 0
    %9 = vsyncpa [#allocation6], 0
    %10 = vsyncpa [#allocation4], 0
    // Predicated region
    $region2: #{tpu_custom_call.1} parent=1 // pred_check
      _
    $region3: #{tpu_custom_call.1} parent=1 // pred_check_branch
      %12 = sbr.rel (0) target = $region5
    $region4: #{tpu_custom_call.1} parent=1 // pred_region
      %14 = vsyncadd [#allocation3], 0
      %s16 = sshll.u32 %s0, 4
      %s17 = int_to_ptr.hbm [resolvable:$true] %s16
      %s18 = sshll.u32 [#allocation2], 4
      %s19 = int_to_ptr.vmem [resolvable:$true] %s18
      %21 = dma.hbm_to_vmem [thread:$0]  %s17, 64, %s19, [#allocation3]
    $region5: #{tpu_custom_call.1} parent=1 // pred_fallthru
      _
    // Predicated region
    $region6: #{tpu_custom_call.1} parent=1 // pred_check
      _
    $region7: #{tpu_custom_call.1} parent=1 // pred_check_branch
      %23 = sbr.rel (0) target = $region9
    $region8: #{tpu_custom_call.1} parent=1 // pred_region
      %25 = vsyncadd [#allocation6], 0
      %s27 = sshll.u32 %s1, 4
      %s28 = int_to_ptr.hbm [resolvable:$true] %s27
      %s29 = sshll.u32 [#allocation5], 4
      %s30 = int_to_ptr.vmem [resolvable:$true] %s29
      %32 = dma.hbm_to_vmem [thread:$0]  %s28, 16, %s30, [#allocation6]
    $region9: #{tpu_custom_call.1} parent=1 // pred_fallthru
      _
    // Predicated region
    $region10: #{tpu_custom_call.1} parent=1 // pred_check
      _
    $region11: #{tpu_custom_call.1} parent=1 // pred_check_branch
      %34 = sbr.rel (0) target = $region13
    $region12: #{tpu_custom_call.1} parent=1 // pred_region
      _
    $region13: #{tpu_custom_call.1} parent=1 // pred_fallthru
      _
    // Predicated region
    $region14: #{tpu_custom_call.1} parent=1 // pred_check
      _
    $region15: #{tpu_custom_call.1} parent=1 // pred_check_branch
      %36 = sbr.rel (0) target = $region17
    $region16: #{tpu_custom_call.1} parent=1 // pred_region
      %38 = dma.done [#allocation3], 64
    $region17: #{tpu_custom_call.1} parent=1 // pred_fallthru
      _
    // Predicated region
    $region18: #{tpu_custom_call.1} parent=1 // pred_check
      _
    $region19: #{tpu_custom_call.1} parent=1 // pred_check_branch
      %40 = sbr.rel (0) target = $region21
    $region20: #{tpu_custom_call.1} parent=1 // pred_region
      %42 = dma.done [#allocation6], 16
    $region21: #{tpu_custom_call.1} parent=1 // pred_fallthru
      _
    %v43 = vld [vmem:[#allocation2] sm:$0xf]
    %v44 = vld [vmem:[#allocation5] sm:$0x1]
    %v45 = vld [vmem:[%s2] sm:$0x1]
    %v47 = vperm.slane %v44, 0
    %v49 = vmul.f32 %v43, %v47
    %vm50 = vcmask 254976
    %v51 = vsel %vm50, %v49, 0.0
    %52 = vadd.xlane.f32.xlu0 %v51
    %v53 = vpop.xlane.xlu0 %52
    %v55 = vperm.slane %v45, 0
    %v57 = vadd.f32 %v53, %v55
    %v58 = vtanh.pop %v57
    %v59 = vmul.f32 %v58, 1.442695
    %v60 = vpow.pop %v59
    %v61 = vadd.f32 %v60, 0.0
    %63 = vset.pattern.permute.xlu0 0
    %64 = vperm.xlu0 %63, %v60
    %v65 = vpop.permute.xlu0 %64
    %v67 = vmul.f32 %v43, %v65
    %v68 = vadd.f32 %v67, 0.0
    %69 = vrot.lane.b32.xlu0 %v47, 32
    %v70 = vpop.permute.xlu0 %69
    %v72 = vmul.f32 %v43, %v70
    %74 = vst [vmem:[#allocation1] ss:$4 sm:$0xff] %v72
    %v75 = vld.sshfl [vmem:[#allocation1] sm:$0xff pattern:$0x73625140]
    %76 = vrot.lane.b32.xlu0 %v75, 96
    %v77 = vpop.permute.xlu0 %76
    %v79 = vsel %vm50, %v77, 0.0
    %80 = vadd.xlane.f32.xlu0 %v79
    %v81 = vpop.xlane.xlu0 %80
    %v82 = vadd.f32 %v81, %v55
    %v83 = vtanh.pop %v82
    %v84 = vmul.f32 %v83, 1.442695
    %v85 = vpow.pop %v84
    %87 = vrot.lane.b32.xlu0 %v85, 127
    %v88 = vpop.permute.xlu0 %87
    %v90 = vadd.f32 %v61, %v88
    %91 = vset.pattern.permute.xlu0 1
    %92 = vperm.xlu0 %91, %v85
    %v93 = vpop.permute.xlu0 %92
    %v95 = vmul.f32 %v43, %v93
    %97 = vrot.lane.b32.xlu0 %v95, 96
    %v98 = vpop.permute.xlu0 %97
    %v100 = vadd.f32 %v68, %v98
    %101 = vrot.lane.b32.xlu0 %v47, 64
    %v102 = vpop.permute.xlu0 %101
    %v104 = vmul.f32 %v43, %v102
    %106 = vst [vmem:[#allocation1] ss:$4 sm:$0xff] %v104
    %v107 = vld.sshfl [vmem:[#allocation1] sm:$0xff pattern:$0x73625140]
    %108 = vrot.lane.b32.xlu0 %v107, 64
    %v109 = vpop.permute.xlu0 %108
    %v111 = vsel %vm50, %v109, 0.0
    %112 = vadd.xlane.f32.xlu0 %v111
    %v113 = vpop.xlane.xlu0 %112
    %v114 = vadd.f32 %v113, %v55
    %v115 = vtanh.pop %v114
    %v116 = vmul.f32 %v115, 1.442695
    %v117 = vpow.pop %v116
    %119 = vrot.lane.b32.xlu0 %v117, 126
    %v120 = vpop.permute.xlu0 %119
    %v122 = vadd.f32 %v90, %v120
    %123 = vset.pattern.permute.xlu0 2
    %124 = vperm.xlu0 %123, %v117
    %v125 = vpop.permute.xlu0 %124
    %v127 = vmul.f32 %v43, %v125
    %129 = vrot.lane.b32.xlu0 %v127, 64
    %v130 = vpop.permute.xlu0 %129
    %v132 = vadd.f32 %v100, %v130
    %133 = vrot.lane.b32.xlu0 %v47, 96
    %v134 = vpop.permute.xlu0 %133
    %v136 = vmul.f32 %v43, %v134
    %138 = vst [vmem:[#allocation1] ss:$4 sm:$0xff] %v136
    %v139 = vld.sshfl [vmem:[#allocation1] sm:$0xff pattern:$0x73625140]
    %140 = vrot.lane.b32.xlu0 %v139, 32
    %v141 = vpop.permute.xlu0 %140
    %v143 = vsel %vm50, %v141, 0.0
    %144 = vadd.xlane.f32.xlu0 %v143
    %v145 = vpop.xlane.xlu0 %144
    %v146 = vadd.f32 %v145, %v55
    %v147 = vtanh.pop %v146
    %v148 = vmul.f32 %v147, 1.442695
    %v149 = vpow.pop %v148
    %151 = vrot.lane.b32.xlu0 %v149, 125
    %v152 = vpop.permute.xlu0 %151
    %v154 = vadd.f32 %v122, %v152
    %155 = vset.pattern.permute.xlu0 3
    %156 = vperm.xlu0 %155, %v149
    %v157 = vpop.permute.xlu0 %156
    %v159 = vmul.f32 %v43, %v157
    %161 = vrot.lane.b32.xlu0 %v159, 32
    %v162 = vpop.permute.xlu0 %161
    %v164 = vadd.f32 %v132, %v162
    %v166 = vrot.slane %v43, 2
    %v168 = vmul.f32 %v166, %v47
    %v169 = vsel %vm50, %v168, 0.0
    %170 = vadd.xlane.f32.xlu0 %v169
    %v171 = vpop.xlane.xlu0 %170
    %v172 = vadd.f32 %v171, %v55
    %v173 = vtanh.pop %v172
    %v174 = vmul.f32 %v173, 1.442695
    %v175 = vpow.pop %v174
    %177 = vrot.lane.b32.xlu0 %v175, 124
    %v178 = vpop.permute.xlu0 %177
    %v180 = vadd.f32 %v154, %v178
    %181 = vset.pattern.permute.xlu0 4
    %182 = vperm.xlu0 %181, %v175
    %v183 = vpop.permute.xlu0 %182
    %v185 = vmul.f32 %v166, %v183
    %v186 = vadd.f32 %v164, %v185
    %187 = vrot.lane.b32.xlu0 %v43, 96
    %v188 = vpop.permute.xlu0 %187
    %v189 = vrot.slane %v188, 2
    %v191 = vmul.f32 %v189, %v47
    %v192 = vsel %vm50, %v191, 0.0
    %193 = vadd.xlane.f32.xlu0 %v192
    %v194 = vpop.xlane.xlu0 %193
    %v195 = vadd.f32 %v194, %v55
    %v196 = vtanh.pop %v195
    %v197 = vmul.f32 %v196, 1.442695
    %v198 = vpow.pop %v197
    %200 = vrot.lane.b32.xlu0 %v198, 123
    %v201 = vpop.permute.xlu0 %200
    %v203 = vadd.f32 %v180, %v201
    %204 = vset.pattern.permute.xlu0 5
    %205 = vperm.xlu0 %204, %v198
    %v206 = vpop.permute.xlu0 %205
    %v208 = vmul.f32 %v189, %v206
    %v209 = vadd.f32 %v186, %v208
    %210 = vrot.lane.b32.xlu0 %v43, 64
    %v211 = vpop.permute.xlu0 %210
    %v212 = vrot.slane %v211, 2
    %v214 = vmul.f32 %v212, %v47
    %v215 = vsel %vm50, %v214, 0.0
    %216 = vadd.xlane.f32.xlu0 %v215
    %v217 = vpop.xlane.xlu0 %216
    %v218 = vadd.f32 %v217, %v55
    %v219 = vtanh.pop %v218
    %v220 = vmul.f32 %v219, 1.442695
    %v221 = vpow.pop %v220
    %223 = vrot.lane.b32.xlu0 %v221, 122
    %v224 = vpop.permute.xlu0 %223
    %v226 = vadd.f32 %v203, %v224
    %227 = vset.pattern.permute.xlu0 6
    %228 = vperm.xlu0 %227, %v221
    %v229 = vpop.permute.xlu0 %228
    %v231 = vmul.f32 %v212, %v229
    %v232 = vadd.f32 %v209, %v231
    %233 = vrot.lane.b32.xlu0 %v43, 32
    %v234 = vpop.permute.xlu0 %233
    %v235 = vrot.slane %v234, 2
    %v237 = vmul.f32 %v235, %v47
    %v238 = vsel %vm50, %v237, 0.0
    %239 = vadd.xlane.f32.xlu0 %v238
    %v240 = vpop.xlane.xlu0 %239
    %v241 = vadd.f32 %v240, %v55
    %v242 = vtanh.pop %v241
    %v243 = vmul.f32 %v242, 1.442695
    %v244 = vpow.pop %v243
    %246 = vrot.lane.b32.xlu0 %v244, 121
    %v247 = vpop.permute.xlu0 %246
    %v249 = vadd.f32 %v226, %v247
    %250 = vset.pattern.permute.xlu0 7
    %251 = vperm.xlu0 %250, %v244
    %v252 = vpop.permute.xlu0 %251
    %v254 = vmul.f32 %v235, %v252
    %v255 = vadd.f32 %v232, %v254
    %v256 = vadd.f32 %v249, 1e-10
    %258 = vset.pattern.permute.xlu0 0
    %259 = vperm.xlu0 %258, %v256
    %v260 = vpop.permute.xlu0 %259
    %v262 = vrcp.pop %v260
    %v263 = vmul.f32 %v260, %v262
    %v264 = vsub.f32 1.0, %v263
    %v265 = vmul.f32 %v262, %v264
    %v266 = vadd.f32 %v262, %v265
    %vm267 = vweird.f32 %v260
    %vm268 = vweird.f32 %v262
    %vm269 = vmor %vm267, %vm268
    %v270 = vsel %vm269, %v262, %v266
    %v271 = vand.u32 2147483647, %v260
    %vm272 = vcmp.eq.f32.partialorder %v271, 8.507059e+37
    %v273 = vand.u32 %v260, 2147483648
    %v274 = vor.u32 1.1754944e-38, %v273
    %v275 = vsel %vm272, %v274, %v270
    %v276 = vmul.f32 %v255, %v275
    %277 = vst.msk [vmem:[#allocation7] sm:$0x3] %vm50, %v276
    // Predicated region
    $region22: #{tpu_custom_call.1} parent=1 // pred_check
      _
    $region23: #{tpu_custom_call.1} parent=1 // pred_check_branch
      %279 = sbr.rel (0) target = $region25
    $region24: #{tpu_custom_call.1} parent=1 // pred_region
      %281 = vsyncadd [#allocation4], 0
      %s283 = sshll.u32 [#allocation7], 4
      %s284 = int_to_ptr.vmem [resolvable:$true] %s283
      %s285 = sshll.u32 %s3, 4
      %s286 = int_to_ptr.hbm [resolvable:$true] %s285
      %288 = dma.vmem_to_hbm [thread:$0]  %s284, 32, %s286, [#allocation4]
    $region25: #{tpu_custom_call.1} parent=1 // pred_fallthru
      _
    // Predicated region
    $region26: #{tpu_custom_call.1} parent=1 // pred_check
      _
    $region27: #{tpu_custom_call.1} parent=1 // pred_check_branch
      %290 = sbr.rel (0) target = $region29
    $region28: #{tpu_custom_call.1} parent=1 // pred_region
      %292 = dma.done [#allocation4], 32
    $region29: #{tpu_custom_call.1} parent=1 // pred_fallthru
      _
    %293 = vsyncpa [#allocation3], 1
    %294 = vsyncpa [#allocation6], 1
    %295 = vsyncpa [#allocation4], 1

</llo_original>
